<compile_context>
chip_gen: v5e
topology: v5e:2x2
jax: 0.10.0
libtpu: 0.0.40
codegen_flags: <defaults>
</compile_context>

<pallas_src>
import jax
import jax.numpy as jnp
from jax.experimental import pallas as pl
from jax.experimental.pallas import tpu as pltpu


def _matmul_kernel(x_ref, w_ref, o_ref):
    # One MXU matmul per (row_tile, K) block of x against the resident
    # (K, N) weight (same block every grid step -> DMA'd once, stays in VMEM).
    o_ref[...] = jnp.dot(
        x_ref[...], w_ref[...], preferred_element_type=jnp.float32
    ).astype(o_ref.dtype)


def my_module_forward(x: jax.Array, weight: jax.Array,
                      *, row_tile: int = 1024,
                      min_rows_for_pallas: int = 4096) -> jax.Array:
    """Equivalent of MyModule.forward: x @ weight  (weight: [10, 10])."""
    assert x.ndim == 2 and weight.ndim == 2
    assert x.shape[-1] == weight.shape[0]
    b, k = x.shape
    n = weight.shape[1]

    # Keep full weight precision: promote both operands to the common dtype
    # instead of silently down-casting an f32 weight to bf16.
    compute_dtype = jnp.promote_types(x.dtype, weight.dtype)
    x_c = x.astype(compute_dtype)
    w_c = weight.astype(compute_dtype)

    # Small/medium batches: a standalone pallas_call is pure launch/DMA
    # overhead and blocks XLA fusion with neighboring ops -> plain dot.
    if b < min_rows_for_pallas:
        return jnp.dot(x_c, w_c,
                       preferred_element_type=jnp.float32).astype(compute_dtype)

    # Pallas path: 1-D grid over row tiles, ragged last block handled by
    # Pallas (no pre-pad of x), lane dims left at their natural size (K=N=10
    # equals the full last dim, so no (8,128) violation, no padding traffic).
    grid = (pl.cdiv(b, row_tile),)

    itemsize = jnp.dtype(compute_dtype).itemsize
    cost = pl.CostEstimate(
        flops=2 * b * k * n,
        transcendentals=0,
        bytes_accessed=(b * k + k * n + b * n) * itemsize,  # weight counted once
    )

    out = pl.pallas_call(
        _matmul_kernel,
        out_shape=jax.ShapeDtypeStruct((b, n), compute_dtype),
        grid=grid,
        in_specs=[
            # x: one (row_tile, K) block per grid step.
            pl.BlockSpec((row_tile, k), lambda i: (i, 0)),
            # weight: same block every step -> a single DMA, resident in VMEM.
            pl.BlockSpec((k, n), lambda i: (0, 0)),
        ],
        out_specs=pl.BlockSpec((row_tile, n), lambda i: (i, 0)),
        # Row tiles are independent -> "parallel" lets v7x's two TensorCores
        # split the grid; harmless on single-TC v5e/v6e.
        compiler_params=pltpu.CompilerParams(
            dimension_semantics=("parallel",)),
        cost_estimate=cost,
    )(x_c, w_c)

    return out


if __name__ == "__main__":
    key = jax.random.PRNGKey(0)
    k_w, k_x, k_big = jax.random.split(key, 3)

    # Parameter: deterministic stand-in for torch.randn(10, 10)
    weight = jax.random.normal(k_w, (10, 10), dtype=jnp.float32)

    # 1) Small batch -> fast path (plain fused jnp.dot, no custom call).
    x_small = jax.random.normal(k_x, (16, 10), dtype=jnp.float32)
    out_small = jax.block_until_ready(my_module_forward(x_small, weight))
    assert out_small.shape == (16, 10)
    assert jnp.allclose(out_small, x_small @ weight, atol=1e-5, rtol=1e-5)

    # 2) Pallas path (thresholds overridden to exercise the kernel): ragged
    #    batch so the cdiv grid / masked last block is tested, multi-step
    #    grid (5 steps) so both v7x TensorCores get work.
    batch = 4 * 512 + 100
    x_big = jax.random.normal(k_big, (batch, 10), dtype=jnp.float32)
    out_big = jax.block_until_ready(
        my_module_forward(x_big, weight, row_tile=512, min_rows_for_pallas=512))
    assert out_big.shape == (batch, 10)
    assert jnp.allclose(out_big, x_big @ weight, atol=1e-5, rtol=1e-5)

    # TODO(synk): original forward has no `return` (returns None) and refers
    # to `self.w` (typo for `self.weight`); we implement the intended matmul.
    print("KERNEL_OK")
</pallas_src>

<mosaic_0001>
module attributes {stable_mosaic.version = 11 : i64} {
  func.func @_matmul_kernel(%arg0: i32, %arg1: memref<512x10xf32, #tpu.memory_space<vmem>>, %arg2: memref<10x10xf32, #tpu.memory_space<vmem>>, %arg3: memref<512x10xf32, #tpu.memory_space<vmem>>) attributes {dimension_semantics = [#tpu.dimension_semantics<parallel>], iteration_bounds = array<i64: 5>, scalar_prefetch = 0 : i64, scratch_operands = 0 : i64, tpu.core_type = #tpu.core_type<tc>, window_params = [{transform_indices = @transform_0, window_bounds = array<i64: 512, 10>}, {pipeline_mode = #tpu.pipeline_mode<synchronous>, transform_indices = @transform_1, window_bounds = array<i64: 10, 10>}, {transform_indices = @transform_2, window_bounds = array<i64: 512, 10>}]} {
    %c0 = arith.constant 0 : index
    %c0_0 = arith.constant 0 : index
    %0 = vector.load %arg1[%c0, %c0_0] : memref<512x10xf32, #tpu.memory_space<vmem>>, vector<512x10xf32>
    %c0_1 = arith.constant 0 : index
    %c0_2 = arith.constant 0 : index
    %1 = vector.load %arg2[%c0_1, %c0_2] : memref<10x10xf32, #tpu.memory_space<vmem>>, vector<10x10xf32>
    %cst = arith.constant dense<0.000000e+00> : vector<512x10xf32>
    %2 = tpu.matmul %0, %1, %cst {dimension_numbers = #tpu.dot_dimension_numbers<[1], [0], [0], [1], [0, 0, 1, 1], [], []>} : vector<512x10xf32>, vector<10x10xf32>, vector<512x10xf32> -> vector<512x10xf32>
    %c0_3 = arith.constant 0 : index
    %c0_4 = arith.constant 0 : index
    %3 = vector.load %arg3[%c0_3, %c0_4] : memref<512x10xf32, #tpu.memory_space<vmem>>, vector<512x10xf32>
    tpu.vector_store %arg3[%c0_3, %c0_4], %2 {strides = array<i32>} : memref<512x10xf32, #tpu.memory_space<vmem>>, vector<512x10xf32>,
    return
  }
  func.func @transform_0(%arg0: i32) -> (i32, i32) {
    %c0_i32 = arith.constant 0 : i32
    %c0_i32_0 = arith.constant 0 : i32
    return %arg0, %c0_i32 : i32, i32
  }
  func.func @transform_1(%arg0: i32) -> (i32, i32) {
    %c0_i32 = arith.constant 0 : i32
    %c0_i32_0 = arith.constant 0 : i32
    %c0_i32_1 = arith.constant 0 : i32
    return %c0_i32, %c0_i32_0 : i32, i32
  }
  func.func @transform_2(%arg0: i32) -> (i32, i32) {
    %c0_i32 = arith.constant 0 : i32
    %c0_i32_0 = arith.constant 0 : i32
    return %arg0, %c0_i32 : i32, i32
  }
}

</mosaic_0001>

<llo_original>
// kernel: tpu_custom_call.1
$region0: #{tpu_custom_call.1}
  #allocation0 [shape = 'u32[]', space=smem, size = 0x4, offset = 0x4, fixed_abs, tag = 'smem constant byte address 0x4 - core index']
  #allocation1 [shape = 'u32[72,128]{1,0:T(1,128)}', space=vmem, size = 0x9000, scoped, tag = 'internal scratch']
  %s0 = inlined_call_operand.vmem [shape: f32[2148,10], index: 0, kind: input, shape index: {}]
  %s1 = inlined_call_operand.vmem [shape: f32[10,10], index: 1, kind: input, shape index: {}]
  %s2 = inlined_call_operand.vmem [shape: f32[2148,10], index: 2, kind: output, shape index: {}]
  %s3 = sld [smem:[#allocation0]]
  $region89: #{tpu_custom_call.1} parent=0
    _
  %s5 = ssub.s32 1, %s3
  %s6 = scalar_select 0, %s5, %s3
  $region1: #{tpu_custom_call.1} parent=0
    #allocation2 [shape = 'u8[524288]{0}', space=vmem, size = 0x80000, scoped, tag = 'output window, operand 0']
    loop: start=0, step=1, limit=7
    $region2: #{tpu_custom_call.1} parent=1 // loop_pre_header
      _
    $region3: #{tpu_custom_call.1} parent=1 // loop_header
      %s8 = sphi 0, %s12
      %p9 = scmp.ge.s32.totalorder %s8, 7
      %s18 = sphi 0, %s20
      %s21 = sphi 0, %s18
      %s22 = sphi 0, %s21
      %s38 = sphi 0, %s22
      %s42 = sphi 0, %s42
      %s44 = sphi 0, %s42
      %s45 = sphi 0, %s44
      %s59 = sphi 0, %s45
      %s65 = sphi 0, %s67
      %s68 = sphi 0, %s65
      %s69 = sphi 0, %s68
      %s85 = sphi 0, %s69
    $region4: #{tpu_custom_call.1} parent=1 // loop_header_branch
      %11 = sbr.rel (%p9) target = $region8
    $region5: #{tpu_custom_call.1} parent=1 // loop_body
      %s13 = ssub.s32 %s8, 1
      %s14 = ssub.s32 %s8, 2
      %s15 = sadd.s32 %s8, 1
      %s16 = ssub.s32 %s8, %s15
      %p17 = scmp.eq.s32.totalorder %s16, 0
      %s19 = sadd.s32 %s18, 1
      %s20 = scalar_select %p17, %s18, %s19
      %p23 = pneg %p17
      %p24 = scmp.eq.s32.totalorder %s8, 4
      %p25 = por %p23, %p24
      %p26 = scmp.ne.s32.totalorder %s18, %s21
      %p27 = scmp.eq.s32.totalorder %s8, 0
      %p28 = por %p26, %p27
      %p29 = scmp.ne.s32.totalorder %s18, %s21
      %p30 = scmp.eq.s32.totalorder %s13, 4
      %p31 = por %p29, %p30
      %p32 = scmp.ne.s32.totalorder %s21, %s22
      %p33 = scmp.eq.s32.totalorder %s13, 0
      %p34 = por %p32, %p33
      %p35 = scmp.ne.s32.totalorder %s21, %s22
      %p36 = scmp.eq.s32.totalorder %s14, 4
      %p37 = por %p35, %p36
      %p39 = scmp.ne.s32.totalorder %s22, %s38
      %p40 = scmp.eq.s32.totalorder %s14, 0
      %p41 = por %p39, %p40
      %s43 = sadd.s32 %s42, 1
      %p46 = scmp.eq.s32.totalorder %s8, 4
      %p47 = scmp.ne.s32.totalorder %s42, %s44
      %p48 = scmp.eq.s32.totalorder %s8, 0
      %p49 = por %p47, %p48
      %p50 = scmp.ne.s32.totalorder %s42, %s44
      %p51 = scmp.eq.s32.totalorder %s13, 4
      %p52 = por %p50, %p51
      %p53 = scmp.ne.s32.totalorder %s44, %s45
      %p54 = scmp.eq.s32.totalorder %s13, 0
      %p55 = por %p53, %p54
      %p56 = scmp.ne.s32.totalorder %s44, %s45
      %p57 = scmp.eq.s32.totalorder %s14, 4
      %p58 = por %p56, %p57
      %p60 = scmp.ne.s32.totalorder %s45, %s59
      %p61 = scmp.eq.s32.totalorder %s14, 0
      %p62 = por %p60, %p61
      %s63 = ssub.s32 %s8, %s15
      %p64 = scmp.eq.s32.totalorder %s63, 0
      %s66 = sadd.s32 %s65, 1
      %s67 = scalar_select %p64, %s65, %s66
      %p70 = pneg %p64
      %p71 = scmp.eq.s32.totalorder %s8, 4
      %p72 = por %p70, %p71
      %p73 = scmp.ne.s32.totalorder %s65, %s68
      %p74 = scmp.eq.s32.totalorder %s8, 0
      %p75 = por %p73, %p74
      %p76 = scmp.ne.s32.totalorder %s65, %s68
      %p77 = scmp.eq.s32.totalorder %s13, 4
      %p78 = por %p76, %p77
      %p79 = scmp.ne.s32.totalorder %s68, %s69
      %p80 = scmp.eq.s32.totalorder %s13, 0
      %p81 = por %p79, %p80
      %p82 = scmp.ne.s32.totalorder %s68, %s69
      %p83 = scmp.eq.s32.totalorder %s14, 4
      %p84 = por %p82, %p83
      %p86 = scmp.ne.s32.totalorder %s69, %s85
      %p87 = scmp.eq.s32.totalorder %s14, 0
      %p88 = por %p86, %p87
      %p89 = scmp.le.s32.totalorder 1, %s8
      %p90 = scmp.lt.s32.totalorder %s8, 6
      %p91 = pnand %p89, %p90
      %p92 = pneg %p91
      // Predicated region
      $region9: #{tpu_custom_call.1} parent=5 // pred_check
        _
      $region10: #{tpu_custom_call.1} parent=5 // pred_check_branch
        %94 = sbr.rel (%p91) target = $region12
      $region11: #{tpu_custom_call.1} parent=5 // pred_region
        %s95 = ssub.s32 %s8, 1
        // Predicated region
        $region13: #{tpu_custom_call.1} parent=11 // pred_check
          %p96 = pneg %p55
        $region14: #{tpu_custom_call.1} parent=11 // pred_check_branch
          %98 = sbr.rel (%p96) target = $region16
        $region15: #{tpu_custom_call.1} parent=11 // pred_region
          _
        $region16: #{tpu_custom_call.1} parent=11 // pred_fallthru
          _
      $region12: #{tpu_custom_call.1} parent=5 // pred_fallthru
        _
      %p99 = scmp.lt.s32.totalorder %s8, 5
      // Predicated region
      $region17: #{tpu_custom_call.1} parent=5 // pred_check
        %p100 = pneg %p99
      $region18: #{tpu_custom_call.1} parent=5 // pred_check_branch
        %102 = sbr.rel (%p100) target = $region20
      $region19: #{tpu_custom_call.1} parent=5 // pred_region
        // Predicated region
        $region21: #{tpu_custom_call.1} parent=19 // pred_check
          %p103 = pneg %p28
        $region22: #{tpu_custom_call.1} parent=19 // pred_check_branch
          %105 = sbr.rel (%p103) target = $region24
        $region23: #{tpu_custom_call.1} parent=19 // pred_region
          %s106 = smul.u32 64, %s8
          %s107 = ssub.s32 269, %s106
          %p108 = scmp.lt.s32.totalorder %s107, 64
          %s109 = scalar_select %p108, %s107, 64
          %s110 = smul.u32 8, %s109
          %p111 = scmp.lt.s32.totalorder %s106, 268
          %s112 = scalar_select %p111, %s106, 268
          %s113 = smul.addr %s112, 8
          %s114 = scalar_lea.vmem %s0, %s113
          %s115 = smul.u32 64, %s8
          %s116 = ssub.s32 269, %s115
          %p117 = scmp.lt.s32.totalorder %s116, 64
          %s118 = scalar_select %p117, %s116, 64
          %s119 = smul.u32 8, %s118
        $region24: #{tpu_custom_call.1} parent=19 // pred_fallthru
          _
      $region20: #{tpu_custom_call.1} parent=5 // pred_fallthru
        _
      %p120 = scmp.le.s32.totalorder 1, %s8
      %p121 = scmp.lt.s32.totalorder %s8, 6
      %p122 = pnand %p120, %p121
      %p123 = pneg %p122
      // Predicated region
      $region25: #{tpu_custom_call.1} parent=5 // pred_check
        _
      $region26: #{tpu_custom_call.1} parent=5 // pred_check_branch
        %125 = sbr.rel (%p122) target = $region28
      $region27: #{tpu_custom_call.1} parent=5 // pred_region
        %s126 = ssub.s32 %s8, 1
        %s127 = smul.u32 64, %s13
        %s128 = ssub.s32 269, %s127
        %p129 = scmp.lt.s32.totalorder %s128, 64
        %s130 = scalar_select %p129, %s128, 64
        %s131 = smul.u32 8, %s130
        %p132 = scmp.lt.s32.totalorder %s127, 268
        %s133 = scalar_select %p132, %s127, 268
        %s134 = smul.addr %s133, 8
        %s135 = scalar_lea.vmem %s0, %s134
        %p136 = pneg %p34
        %p137 = pneg %p31
        %p138 = pneg %p55
        %p139 = pneg %p52
        %p140 = pneg %p81
        %p141 = pneg %p78
        %s142 = sand.u32 %s68, 1
        %s143 = sand.u32 %s68, 1
        %s144 = smul.addr %s143, 512
        %s145 = scalar_lea.vmem [#allocation2], %s144
        %s146 = smul.u32 64, %s13
        %s147 = ssub.s32 269, %s146
        %p148 = scmp.lt.s32.totalorder %s147, 64
        %s149 = scalar_select %p148, %s147, 64
        %s150 = smul.u32 8, %s149
        %p151 = scmp.lt.s32.totalorder %s146, 268
        %s152 = scalar_select %p151, %s146, 268
        %s153 = smul.addr %s152, 8
        %s154 = scalar_lea.vmem %s0, %s153
        %s155 = smul.u32 64, %s13
        %s156 = ssub.s32 269, %s155
        %p157 = scmp.lt.s32.totalorder %s156, 64
        %s158 = scalar_select %p157, %s156, 64
        %s159 = smul.u32 8, %s158
        %s160 = smul.u32 64, %s13
        %s161 = ssub.s32 269, %s160
        %p162 = scmp.lt.s32.totalorder %s161, 64
        %s163 = scalar_select %p162, %s161, 64
        %s164 = smul.u32 8, %s163
        %v165 = vld [vmem:[%s154] sm:$0xff]
        %v166 = vld [vmem:[%s154 + $0x8] sm:$0xff]
        %v167 = vld [vmem:[%s154 + $0x10] sm:$0xff]
        %v168 = vld [vmem:[%s154 + $0x18] sm:$0xff]
        %v169 = vld [vmem:[%s154 + $0x20] sm:$0xff]
        %v170 = vld [vmem:[%s154 + $0x28] sm:$0xff]
        %v171 = vld [vmem:[%s154 + $0x30] sm:$0xff]
        %v172 = vld [vmem:[%s154 + $0x38] sm:$0xff]
        %v173 = vld [vmem:[%s154 + $0x40] sm:$0xff]
        %v174 = vld [vmem:[%s154 + $0x48] sm:$0xff]
        %v175 = vld [vmem:[%s154 + $0x50] sm:$0xff]
        %v176 = vld [vmem:[%s154 + $0x58] sm:$0xff]
        %v177 = vld [vmem:[%s154 + $0x60] sm:$0xff]
        %v178 = vld [vmem:[%s154 + $0x68] sm:$0xff]
        %v179 = vld [vmem:[%s154 + $0x70] sm:$0xff]
        %v180 = vld [vmem:[%s154 + $0x78] sm:$0xff]
        %v181 = vld [vmem:[%s154 + $0x80] sm:$0xff]
        %v182 = vld [vmem:[%s154 + $0x88] sm:$0xff]
        %v183 = vld [vmem:[%s154 + $0x90] sm:$0xff]
        %v184 = vld [vmem:[%s154 + $0x98] sm:$0xff]
        %v185 = vld [vmem:[%s154 + $0xa0] sm:$0xff]
        %v186 = vld [vmem:[%s154 + $0xa8] sm:$0xff]
        %v187 = vld [vmem:[%s154 + $0xb0] sm:$0xff]
        %v188 = vld [vmem:[%s154 + $0xb8] sm:$0xff]
        %v189 = vld [vmem:[%s154 + $0xc0] sm:$0xff]
        %v190 = vld [vmem:[%s154 + $0xc8] sm:$0xff]
        %v191 = vld [vmem:[%s154 + $0xd0] sm:$0xff]
        %v192 = vld [vmem:[%s154 + $0xd8] sm:$0xff]
        %v193 = vld [vmem:[%s154 + $0xe0] sm:$0xff]
        %v194 = vld [vmem:[%s154 + $0xe8] sm:$0xff]
        %v195 = vld [vmem:[%s154 + $0xf0] sm:$0xff]
        %v196 = vld [vmem:[%s154 + $0xf8] sm:$0xff]
        %v197 = vld [vmem:[%s154 + $0x100] sm:$0xff]
        %v198 = vld [vmem:[%s154 + $0x108] sm:$0xff]
        %v199 = vld [vmem:[%s154 + $0x110] sm:$0xff]
        %v200 = vld [vmem:[%s154 + $0x118] sm:$0xff]
        %v201 = vld [vmem:[%s154 + $0x120] sm:$0xff]
        %v202 = vld [vmem:[%s154 + $0x128] sm:$0xff]
        %v203 = vld [vmem:[%s154 + $0x130] sm:$0xff]
        %v204 = vld [vmem:[%s154 + $0x138] sm:$0xff]
        %v205 = vld [vmem:[%s154 + $0x140] sm:$0xff]
        %v206 = vld [vmem:[%s154 + $0x148] sm:$0xff]
        %v207 = vld [vmem:[%s154 + $0x150] sm:$0xff]
        %v208 = vld [vmem:[%s154 + $0x158] sm:$0xff]
        %v209 = vld [vmem:[%s154 + $0x160] sm:$0xff]
        %v210 = vld [vmem:[%s154 + $0x168] sm:$0xff]
        %v211 = vld [vmem:[%s154 + $0x170] sm:$0xff]
        %v212 = vld [vmem:[%s154 + $0x178] sm:$0xff]
        %v213 = vld [vmem:[%s154 + $0x180] sm:$0xff]
        %v214 = vld [vmem:[%s154 + $0x188] sm:$0xff]
        %v215 = vld [vmem:[%s154 + $0x190] sm:$0xff]
        %v216 = vld [vmem:[%s154 + $0x198] sm:$0xff]
        %v217 = vld [vmem:[%s154 + $0x1a0] sm:$0xff]
        %v218 = vld [vmem:[%s154 + $0x1a8] sm:$0xff]
        %v219 = vld [vmem:[%s154 + $0x1b0] sm:$0xff]
        %v220 = vld [vmem:[%s154 + $0x1b8] sm:$0xff]
        %v221 = vld [vmem:[%s154 + $0x1c0] sm:$0xff]
        %v222 = vld [vmem:[%s154 + $0x1c8] sm:$0xff]
        %v223 = vld [vmem:[%s154 + $0x1d0] sm:$0xff]
        %v224 = vld [vmem:[%s154 + $0x1d8] sm:$0xff]
        %v225 = vld [vmem:[%s154 + $0x1e0] sm:$0xff]
        %v226 = vld [vmem:[%s154 + $0x1e8] sm:$0xff]
        %v227 = vld [vmem:[%s154 + $0x1f0] sm:$0xff]
        %v228 = vld [vmem:[%s154 + $0x1f8] sm:$0xff]
        %v229 = vld [vmem:[%s1] sm:$0xff]
        %v230 = vld [vmem:[%s1 + $0x8] sm:$0x3]
        %vm231 = vcmask 80896
        %v233 = vsel %vm231, %v165, 0
        %v236 = vsel %vm231, %v166, 0
        %v239 = vsel %vm231, %v167, 0
        %v242 = vsel %vm231, %v168, 0
        %v245 = vsel %vm231, %v169, 0
        %v248 = vsel %vm231, %v170, 0
        %v251 = vsel %vm231, %v171, 0
        %v254 = vsel %vm231, %v172, 0
        %v257 = vsel %vm231, %v173, 0
        %v260 = vsel %vm231, %v174, 0
        %v263 = vsel %vm231, %v175, 0
        %v266 = vsel %vm231, %v176, 0
        %v269 = vsel %vm231, %v177, 0
        %v272 = vsel %vm231, %v178, 0
        %v275 = vsel %vm231, %v179, 0
        %v278 = vsel %vm231, %v180, 0
        %v281 = vsel %vm231, %v181, 0
        %v284 = vsel %vm231, %v182, 0
        %v287 = vsel %vm231, %v183, 0
        %v290 = vsel %vm231, %v184, 0
        %v293 = vsel %vm231, %v185, 0
        %v296 = vsel %vm231, %v186, 0
        %v299 = vsel %vm231, %v187, 0
        %v302 = vsel %vm231, %v188, 0
        %v305 = vsel %vm231, %v189, 0
        %v308 = vsel %vm231, %v190, 0
        %v311 = vsel %vm231, %v191, 0
        %v314 = vsel %vm231, %v192, 0
        %v317 = vsel %vm231, %v193, 0
        %v320 = vsel %vm231, %v194, 0
        %v323 = vsel %vm231, %v195, 0
        %v326 = vsel %vm231, %v196, 0
        %v329 = vsel %vm231, %v197, 0
        %v332 = vsel %vm231, %v198, 0
        %v335 = vsel %vm231, %v199, 0
        %v338 = vsel %vm231, %v200, 0
        %v341 = vsel %vm231, %v201, 0
        %v344 = vsel %vm231, %v202, 0
        %v347 = vsel %vm231, %v203, 0
        %v350 = vsel %vm231, %v204, 0
        %v353 = vsel %vm231, %v205, 0
        %v356 = vsel %vm231, %v206, 0
        %v359 = vsel %vm231, %v207, 0
        %v362 = vsel %vm231, %v208, 0
        %v365 = vsel %vm231, %v209, 0
        %v368 = vsel %vm231, %v210, 0
        %v371 = vsel %vm231, %v211, 0
        %v374 = vsel %vm231, %v212, 0
        %v377 = vsel %vm231, %v213, 0
        %v380 = vsel %vm231, %v214, 0
        %v383 = vsel %vm231, %v215, 0
        %v386 = vsel %vm231, %v216, 0
        %v389 = vsel %vm231, %v217, 0
        %v392 = vsel %vm231, %v218, 0
        %v395 = vsel %vm231, %v219, 0
        %v398 = vsel %vm231, %v220, 0
        %v401 = vsel %vm231, %v221, 0
        %v404 = vsel %vm231, %v222, 0
        %v407 = vsel %vm231, %v223, 0
        %v410 = vsel %vm231, %v224, 0
        %v413 = vsel %vm231, %v225, 0
        %v416 = vsel %vm231, %v226, 0
        %v419 = vsel %vm231, %v227, 0
        %v422 = vsel %vm231, %v228, 0
        %vm424 = vcmask 1041408
        %v426 = vsel %vm424, %v230, 0
        %428 = vmatpush.msra.mxu0 0.0
        %429 = vmatpush.msra.mxu0 0.0
        %430 = vmatpush.msra.mxu0 0.0
        %431 = vmatpush.msra.mxu0 0.0
        %432 = vmatpush.msra.mxu0 0.0
        %433 = vmatpush.msra.mxu0 0.0
        %434 = vmatpush.msra.mxu0 0.0
        %435 = vmatpush.msra.mxu0 0.0
        %436 = vmatpush.msra.mxu0 0.0
        %437 = vmatpush.msra.mxu0 0.0
        %438 = vmatpush.msra.mxu0 0.0
        %439 = vmatpush.msra.mxu0 0.0
        %440 = vmatpush.msra.mxu0 0.0
        %441 = vmatpush.msra.mxu0 0.0
        %442 = vmatpush.msra.mxu0 %v426
        %443 = vmatpush.msra.mxu0 %v229
        %444 = vmatmul.f32.gmra.mxu0 %v233
        %v445 = vpop.f32.mrf.mxu0
        %v446 = vadd.f32 0.0, %v445
        %447 = vmatmul.f32.gmra.mxu0 %v236
        %v448 = vpop.f32.mrf.mxu0
        %v449 = vadd.f32 0.0, %v448
        %450 = vmatmul.f32.gmra.mxu0 %v239
        %v451 = vpop.f32.mrf.mxu0
        %v452 = vadd.f32 0.0, %v451
        %453 = vmatmul.f32.gmra.mxu0 %v242
        %v454 = vpop.f32.mrf.mxu0
        %v455 = vadd.f32 0.0, %v454
        %456 = vmatmul.f32.gmra.mxu0 %v245
        %v457 = vpop.f32.mrf.mxu0
        %v458 = vadd.f32 0.0, %v457
        %459 = vmatmul.f32.gmra.mxu0 %v248
        %v460 = vpop.f32.mrf.mxu0
        %v461 = vadd.f32 0.0, %v460
        %462 = vmatmul.f32.gmra.mxu0 %v251
        %v463 = vpop.f32.mrf.mxu0
        %v464 = vadd.f32 0.0, %v463
        %465 = vmatmul.f32.gmra.mxu0 %v254
        %v466 = vpop.f32.mrf.mxu0
        %v467 = vadd.f32 0.0, %v466
        %468 = vmatmul.f32.gmra.mxu0 %v257
        %v469 = vpop.f32.mrf.mxu0
        %v470 = vadd.f32 0.0, %v469
        %471 = vmatmul.f32.gmra.mxu0 %v260
        %v472 = vpop.f32.mrf.mxu0
        %v473 = vadd.f32 0.0, %v472
        %474 = vmatmul.f32.gmra.mxu0 %v263
        %v475 = vpop.f32.mrf.mxu0
        %v476 = vadd.f32 0.0, %v475
        %477 = vmatmul.f32.gmra.mxu0 %v266
        %v478 = vpop.f32.mrf.mxu0
        %v479 = vadd.f32 0.0, %v478
        %480 = vmatmul.f32.gmra.mxu0 %v269
        %v481 = vpop.f32.mrf.mxu0
        %v482 = vadd.f32 0.0, %v481
        %483 = vmatmul.f32.gmra.mxu0 %v272
        %v484 = vpop.f32.mrf.mxu0
        %v485 = vadd.f32 0.0, %v484
        %486 = vmatmul.f32.gmra.mxu0 %v275
        %v487 = vpop.f32.mrf.mxu0
        %v488 = vadd.f32 0.0, %v487
        %489 = vmatmul.f32.gmra.mxu0 %v278
        %v490 = vpop.f32.mrf.mxu0
        %v491 = vadd.f32 0.0, %v490
        %492 = vmatmul.f32.gmra.mxu0 %v281
        %v493 = vpop.f32.mrf.mxu0
        %v494 = vadd.f32 0.0, %v493
        %495 = vmatmul.f32.gmra.mxu0 %v284
        %v496 = vpop.f32.mrf.mxu0
        %v497 = vadd.f32 0.0, %v496
        %498 = vmatmul.f32.gmra.mxu0 %v287
        %v499 = vpop.f32.mrf.mxu0
        %v500 = vadd.f32 0.0, %v499
        %501 = vmatmul.f32.gmra.mxu0 %v290
        %v502 = vpop.f32.mrf.mxu0
        %v503 = vadd.f32 0.0, %v502
        %504 = vmatmul.f32.gmra.mxu0 %v293
        %v505 = vpop.f32.mrf.mxu0
        %v506 = vadd.f32 0.0, %v505
        %507 = vmatmul.f32.gmra.mxu0 %v296
        %v508 = vpop.f32.mrf.mxu0
        %v509 = vadd.f32 0.0, %v508
        %510 = vmatmul.f32.gmra.mxu0 %v299
        %v511 = vpop.f32.mrf.mxu0
        %v512 = vadd.f32 0.0, %v511
        %513 = vmatmul.f32.gmra.mxu0 %v302
        %v514 = vpop.f32.mrf.mxu0
        %v515 = vadd.f32 0.0, %v514
        %516 = vmatmul.f32.gmra.mxu0 %v305
        %v517 = vpop.f32.mrf.mxu0
        %v518 = vadd.f32 0.0, %v517
        %519 = vmatmul.f32.gmra.mxu0 %v308
        %v520 = vpop.f32.mrf.mxu0
        %v521 = vadd.f32 0.0, %v520
        %522 = vmatmul.f32.gmra.mxu0 %v311
        %v523 = vpop.f32.mrf.mxu0
        %v524 = vadd.f32 0.0, %v523
        %525 = vmatmul.f32.gmra.mxu0 %v314
        %v526 = vpop.f32.mrf.mxu0
        %v527 = vadd.f32 0.0, %v526
        %528 = vmatmul.f32.gmra.mxu0 %v317
        %v529 = vpop.f32.mrf.mxu0
        %v530 = vadd.f32 0.0, %v529
        %531 = vmatmul.f32.gmra.mxu0 %v320
        %v532 = vpop.f32.mrf.mxu0
        %v533 = vadd.f32 0.0, %v532
        %534 = vmatmul.f32.gmra.mxu0 %v323
        %v535 = vpop.f32.mrf.mxu0
        %v536 = vadd.f32 0.0, %v535
        %537 = vmatmul.f32.gmra.mxu0 %v326
        %v538 = vpop.f32.mrf.mxu0
        %v539 = vadd.f32 0.0, %v538
        %540 = vmatmul.f32.gmra.mxu0 %v329
        %v541 = vpop.f32.mrf.mxu0
        %v542 = vadd.f32 0.0, %v541
        %543 = vmatmul.f32.gmra.mxu0 %v332
        %v544 = vpop.f32.mrf.mxu0
        %v545 = vadd.f32 0.0, %v544
        %546 = vmatmul.f32.gmra.mxu0 %v335
        %v547 = vpop.f32.mrf.mxu0
        %v548 = vadd.f32 0.0, %v547
        %549 = vmatmul.f32.gmra.mxu0 %v338
        %v550 = vpop.f32.mrf.mxu0
        %v551 = vadd.f32 0.0, %v550
        %552 = vmatmul.f32.gmra.mxu0 %v341
        %v553 = vpop.f32.mrf.mxu0
        %v554 = vadd.f32 0.0, %v553
        %555 = vmatmul.f32.gmra.mxu0 %v344
        %v556 = vpop.f32.mrf.mxu0
        %v557 = vadd.f32 0.0, %v556
        %558 = vmatmul.f32.gmra.mxu0 %v347
        %v559 = vpop.f32.mrf.mxu0
        %v560 = vadd.f32 0.0, %v559
        %561 = vmatmul.f32.gmra.mxu0 %v350
        %v562 = vpop.f32.mrf.mxu0
        %v563 = vadd.f32 0.0, %v562
        %564 = vmatmul.f32.gmra.mxu0 %v353
        %v565 = vpop.f32.mrf.mxu0
        %v566 = vadd.f32 0.0, %v565
        %567 = vmatmul.f32.gmra.mxu0 %v356
        %v568 = vpop.f32.mrf.mxu0
        %v569 = vadd.f32 0.0, %v568
        %570 = vmatmul.f32.gmra.mxu0 %v359
        %v571 = vpop.f32.mrf.mxu0
        %v572 = vadd.f32 0.0, %v571
        %573 = vmatmul.f32.gmra.mxu0 %v362
        %v574 = vpop.f32.mrf.mxu0
        %v575 = vadd.f32 0.0, %v574
        %576 = vmatmul.f32.gmra.mxu0 %v365
        %v577 = vpop.f32.mrf.mxu0
        %v578 = vadd.f32 0.0, %v577
        %579 = vmatmul.f32.gmra.mxu0 %v368
        %v580 = vpop.f32.mrf.mxu0
        %v581 = vadd.f32 0.0, %v580
        %582 = vmatmul.f32.gmra.mxu0 %v371
        %v583 = vpop.f32.mrf.mxu0
        %v584 = vadd.f32 0.0, %v583
        %585 = vmatmul.f32.gmra.mxu0 %v374
        %v586 = vpop.f32.mrf.mxu0
        %v587 = vadd.f32 0.0, %v586
        %588 = vmatmul.f32.gmra.mxu0 %v377
        %v589 = vpop.f32.mrf.mxu0
        %v590 = vadd.f32 0.0, %v589
        %591 = vmatmul.f32.gmra.mxu0 %v380
        %v592 = vpop.f32.mrf.mxu0
        %v593 = vadd.f32 0.0, %v592
        %594 = vmatmul.f32.gmra.mxu0 %v383
        %v595 = vpop.f32.mrf.mxu0
        %v596 = vadd.f32 0.0, %v595
        %597 = vmatmul.f32.gmra.mxu0 %v386
        %v598 = vpop.f32.mrf.mxu0
        %v599 = vadd.f32 0.0, %v598
        %600 = vmatmul.f32.gmra.mxu0 %v389
        %v601 = vpop.f32.mrf.mxu0
        %v602 = vadd.f32 0.0, %v601
        %603 = vmatmul.f32.gmra.mxu0 %v392
        %v604 = vpop.f32.mrf.mxu0
        %v605 = vadd.f32 0.0, %v604
        %606 = vmatmul.f32.gmra.mxu0 %v395
        %v607 = vpop.f32.mrf.mxu0
        %v608 = vadd.f32 0.0, %v607
        %609 = vmatmul.f32.gmra.mxu0 %v398
        %v610 = vpop.f32.mrf.mxu0
        %v611 = vadd.f32 0.0, %v610
        %612 = vmatmul.f32.gmra.mxu0 %v401
        %v613 = vpop.f32.mrf.mxu0
        %v614 = vadd.f32 0.0, %v613
        %615 = vmatmul.f32.gmra.mxu0 %v404
        %v616 = vpop.f32.mrf.mxu0
        %v617 = vadd.f32 0.0, %v616
        %618 = vmatmul.f32.gmra.mxu0 %v407
        %v619 = vpop.f32.mrf.mxu0
        %v620 = vadd.f32 0.0, %v619
        %621 = vmatmul.f32.gmra.mxu0 %v410
        %v622 = vpop.f32.mrf.mxu0
        %v623 = vadd.f32 0.0, %v622
        %624 = vmatmul.f32.gmra.mxu0 %v413
        %v625 = vpop.f32.mrf.mxu0
        %v626 = vadd.f32 0.0, %v625
        %627 = vmatmul.f32.gmra.mxu0 %v416
        %v628 = vpop.f32.mrf.mxu0
        %v629 = vadd.f32 0.0, %v628
        %630 = vmatmul.f32.gmra.mxu0 %v419
        %v631 = vpop.f32.mrf.mxu0
        %v632 = vadd.f32 0.0, %v631
        %633 = vmatmul.f32.gmra.mxu0 %v422
        %v634 = vpop.f32.mrf.mxu0
        %v635 = vadd.f32 0.0, %v634
        %636 = vdwg.mxu0
        %637 = vst.msk [vmem:[%s145] sm:$0xff] %vm231, %v446
        %638 = vst.msk [vmem:[%s145 + $0x8] sm:$0xff] %vm231, %v449
        %639 = vst.msk [vmem:[%s145 + $0x10] sm:$0xff] %vm231, %v452
        %640 = vst.msk [vmem:[%s145 + $0x18] sm:$0xff] %vm231, %v455
        %641 = vst.msk [vmem:[%s145 + $0x20] sm:$0xff] %vm231, %v458
        %642 = vst.msk [vmem:[%s145 + $0x28] sm:$0xff] %vm231, %v461
        %643 = vst.msk [vmem:[%s145 + $0x30] sm:$0xff] %vm231, %v464
        %644 = vst.msk [vmem:[%s145 + $0x38] sm:$0xff] %vm231, %v467
        %645 = vst.msk [vmem:[%s145 + $0x40] sm:$0xff] %vm231, %v470
        %646 = vst.msk [vmem:[%s145 + $0x48] sm:$0xff] %vm231, %v473
        %647 = vst.msk [vmem:[%s145 + $0x50] sm:$0xff] %vm231, %v476
        %648 = vst.msk [vmem:[%s145 + $0x58] sm:$0xff] %vm231, %v479
        %649 = vst.msk [vmem:[%s145 + $0x60] sm:$0xff] %vm231, %v482
        %650 = vst.msk [vmem:[%s145 + $0x68] sm:$0xff] %vm231, %v485
        %651 = vst.msk [vmem:[%s145 + $0x70] sm:$0xff] %vm231, %v488
        %652 = vst.msk [vmem:[%s145 + $0x78] sm:$0xff] %vm231, %v491
        %653 = vst.msk [vmem:[%s145 + $0x80] sm:$0xff] %vm231, %v494
        %654 = vst.msk [vmem:[%s145 + $0x88] sm:$0xff] %vm231, %v497
        %655 = vst.msk [vmem:[%s145 + $0x90] sm:$0xff] %vm231, %v500
        %656 = vst.msk [vmem:[%s145 + $0x98] sm:$0xff] %vm231, %v503
        %657 = vst.msk [vmem:[%s145 + $0xa0] sm:$0xff] %vm231, %v506
        %658 = vst.msk [vmem:[%s145 + $0xa8] sm:$0xff] %vm231, %v509
        %659 = vst.msk [vmem:[%s145 + $0xb0] sm:$0xff] %vm231, %v512
        %660 = vst.msk [vmem:[%s145 + $0xb8] sm:$0xff] %vm231, %v515
        %661 = vst.msk [vmem:[%s145 + $0xc0] sm:$0xff] %vm231, %v518
        %662 = vst.msk [vmem:[%s145 + $0xc8] sm:$0xff] %vm231, %v521
        %663 = vst.msk [vmem:[%s145 + $0xd0] sm:$0xff] %vm231, %v524
        %664 = vst.msk [vmem:[%s145 + $0xd8] sm:$0xff] %vm231, %v527
        %665 = vst.msk [vmem:[%s145 + $0xe0] sm:$0xff] %vm231, %v530
        %666 = vst.msk [vmem:[%s145 + $0xe8] sm:$0xff] %vm231, %v533
        %667 = vst.msk [vmem:[%s145 + $0xf0] sm:$0xff] %vm231, %v536
        %668 = vst.msk [vmem:[%s145 + $0xf8] sm:$0xff] %vm231, %v539
        %669 = vst.msk [vmem:[%s145 + $0x100] sm:$0xff] %vm231, %v542
        %670 = vst.msk [vmem:[%s145 + $0x108] sm:$0xff] %vm231, %v545
        %671 = vst.msk [vmem:[%s145 + $0x110] sm:$0xff] %vm231, %v548
        %672 = vst.msk [vmem:[%s145 + $0x118] sm:$0xff] %vm231, %v551
        %673 = vst.msk [vmem:[%s145 + $0x120] sm:$0xff] %vm231, %v554
        %674 = vst.msk [vmem:[%s145 + $0x128] sm:$0xff] %vm231, %v557
        %675 = vst.msk [vmem:[%s145 + $0x130] sm:$0xff] %vm231, %v560
        %676 = vst.msk [vmem:[%s145 + $0x138] sm:$0xff] %vm231, %v563
        %677 = vst.msk [vmem:[%s145 + $0x140] sm:$0xff] %vm231, %v566
        %678 = vst.msk [vmem:[%s145 + $0x148] sm:$0xff] %vm231, %v569
        %679 = vst.msk [vmem:[%s145 + $0x150] sm:$0xff] %vm231, %v572
        %680 = vst.msk [vmem:[%s145 + $0x158] sm:$0xff] %vm231, %v575
        %681 = vst.msk [vmem:[%s145 + $0x160] sm:$0xff] %vm231, %v578
        %682 = vst.msk [vmem:[%s145 + $0x168] sm:$0xff] %vm231, %v581
        %683 = vst.msk [vmem:[%s145 + $0x170] sm:$0xff] %vm231, %v584
        %684 = vst.msk [vmem:[%s145 + $0x178] sm:$0xff] %vm231, %v587
        %685 = vst.msk [vmem:[%s145 + $0x180] sm:$0xff] %vm231, %v590
        %686 = vst.msk [vmem:[%s145 + $0x188] sm:$0xff] %vm231, %v593
        %687 = vst.msk [vmem:[%s145 + $0x190] sm:$0xff] %vm231, %v596
        %688 = vst.msk [vmem:[%s145 + $0x198] sm:$0xff] %vm231, %v599
        %689 = vst.msk [vmem:[%s145 + $0x1a0] sm:$0xff] %vm231, %v602
        %690 = vst.msk [vmem:[%s145 + $0x1a8] sm:$0xff] %vm231, %v605
        %691 = vst.msk [vmem:[%s145 + $0x1b0] sm:$0xff] %vm231, %v608
        %692 = vst.msk [vmem:[%s145 + $0x1b8] sm:$0xff] %vm231, %v611
        %693 = vst.msk [vmem:[%s145 + $0x1c0] sm:$0xff] %vm231, %v614
        %694 = vst.msk [vmem:[%s145 + $0x1c8] sm:$0xff] %vm231, %v617
        %695 = vst.msk [vmem:[%s145 + $0x1d0] sm:$0xff] %vm231, %v620
        %696 = vst.msk [vmem:[%s145 + $0x1d8] sm:$0xff] %vm231, %v623
        %697 = vst.msk [vmem:[%s145 + $0x1e0] sm:$0xff] %vm231, %v626
        %698 = vst.msk [vmem:[%s145 + $0x1e8] sm:$0xff] %vm231, %v629
        %699 = vst.msk [vmem:[%s145 + $0x1f0] sm:$0xff] %vm231, %v632
        %700 = vst.msk [vmem:[%s145 + $0x1f8] sm:$0xff] %vm231, %v635
        %s701 = sand.u32 %s68, 1
        %s702 = sand.u32 %s68, 1
        %s703 = smul.addr %s702, 512
        %s704 = scalar_lea.vmem [#allocation2], %s703
        // Predicated region
        $region29: #{tpu_custom_call.1} parent=27 // pred_check
          %p705 = pneg %p78
        $region30: #{tpu_custom_call.1} parent=27 // pred_check_branch
          %707 = sbr.rel (%p705) target = $region32
        $region31: #{tpu_custom_call.1} parent=27 // pred_region
          %s708 = smul.u32 64, %s13
          %s709 = ssub.s32 269, %s708
          %p710 = scmp.lt.s32.totalorder %s709, 64
          %s711 = scalar_select %p710, %s709, 64
          %s712 = smul.u32 8, %s711
          %p713 = scmp.ne.s32.totalorder 0, %s712
          %s714 = smul.addr %s708, 8
          %s715 = scalar_lea.vmem %s2, %s714
          // Predicated region
          $region33: #{tpu_custom_call.1} parent=31 // pred_check
            %p716 = pneg %p713
          $region34: #{tpu_custom_call.1} parent=31 // pred_check_branch
            %718 = sbr.rel (%p716) target = $region36
          $region35: #{tpu_custom_call.1} parent=31 // pred_region
            // Predicated region
            $region37: #{tpu_custom_call.1} parent=35 // pred_check
              _
            $region38: #{tpu_custom_call.1} parent=35 // pred_check_branch
              %720 = sbr.rel (0) target = $region40
            $region39: #{tpu_custom_call.1} parent=35 // pred_region
              // Predicated region
              $region59: #{tpu_custom_call.1} parent=39 // pred_check
                _
              $region60: #{tpu_custom_call.1} parent=39 // pred_check_branch
                %832 = sbr.rel (0) target = $region62
              $region61: #{tpu_custom_call.1} parent=39 // pred_region
                %s833 = sshrl.u32 %s711, 5
                // While loop
                $region63: #{tpu_custom_call.1} parent=61 // loop_pre_header
                  _
                $region64: #{tpu_custom_call.1} parent=61 // loop_header
                  %s835 = sphi 0, %s837
                  %p836 = scmp.ge.s32.totalorder %s835, %s833
                  %s840 = sphi 0, %s909
                  %s841 = sphi %s704, %s912
                  %s842 = sphi %s715, %s913
                $region65: #{tpu_custom_call.1} parent=61 // loop_header_branch
                  %839 = sbr.rel (%p836) target = $region69
                $region66: #{tpu_custom_call.1} parent=61 // loop_body
                  %v843 = vld [vmem:[%s841] sm:$0xff]
                  %844 = vst [vmem:[%s842] sm:$0xff] %v843
                  %v845 = vld [vmem:[%s841 + $0x8] sm:$0xff]
                  %846 = vst [vmem:[%s842 + $0x8] sm:$0xff] %v845
                  %v847 = vld [vmem:[%s841 + $0x10] sm:$0xff]
                  %848 = vst [vmem:[%s842 + $0x10] sm:$0xff] %v847
                  %v849 = vld [vmem:[%s841 + $0x18] sm:$0xff]
                  %850 = vst [vmem:[%s842 + $0x18] sm:$0xff] %v849
                  %v851 = vld [vmem:[%s841 + $0x20] sm:$0xff]
                  %852 = vst [vmem:[%s842 + $0x20] sm:$0xff] %v851
                  %v853 = vld [vmem:[%s841 + $0x28] sm:$0xff]
                  %854 = vst [vmem:[%s842 + $0x28] sm:$0xff] %v853
                  %v855 = vld [vmem:[%s841 + $0x30] sm:$0xff]
                  %856 = vst [vmem:[%s842 + $0x30] sm:$0xff] %v855
                  %v857 = vld [vmem:[%s841 + $0x38] sm:$0xff]
                  %858 = vst [vmem:[%s842 + $0x38] sm:$0xff] %v857
                  %v859 = vld [vmem:[%s841 + $0x40] sm:$0xff]
                  %860 = vst [vmem:[%s842 + $0x40] sm:$0xff] %v859
                  %v861 = vld [vmem:[%s841 + $0x48] sm:$0xff]
                  %862 = vst [vmem:[%s842 + $0x48] sm:$0xff] %v861
                  %v863 = vld [vmem:[%s841 + $0x50] sm:$0xff]
                  %864 = vst [vmem:[%s842 + $0x50] sm:$0xff] %v863
                  %v865 = vld [vmem:[%s841 + $0x58] sm:$0xff]
                  %866 = vst [vmem:[%s842 + $0x58] sm:$0xff] %v865
                  %v867 = vld [vmem:[%s841 + $0x60] sm:$0xff]
                  %868 = vst [vmem:[%s842 + $0x60] sm:$0xff] %v867
                  %v869 = vld [vmem:[%s841 + $0x68] sm:$0xff]
                  %870 = vst [vmem:[%s842 + $0x68] sm:$0xff] %v869
                  %v871 = vld [vmem:[%s841 + $0x70] sm:$0xff]
                  %872 = vst [vmem:[%s842 + $0x70] sm:$0xff] %v871
                  %v873 = vld [vmem:[%s841 + $0x78] sm:$0xff]
                  %874 = vst [vmem:[%s842 + $0x78] sm:$0xff] %v873
                  %v875 = vld [vmem:[%s841 + $0x80] sm:$0xff]
                  %876 = vst [vmem:[%s842 + $0x80] sm:$0xff] %v875
                  %v877 = vld [vmem:[%s841 + $0x88] sm:$0xff]
                  %878 = vst [vmem:[%s842 + $0x88] sm:$0xff] %v877
                  %v879 = vld [vmem:[%s841 + $0x90] sm:$0xff]
                  %880 = vst [vmem:[%s842 + $0x90] sm:$0xff] %v879
                  %v881 = vld [vmem:[%s841 + $0x98] sm:$0xff]
                  %882 = vst [vmem:[%s842 + $0x98] sm:$0xff] %v881
                  %v883 = vld [vmem:[%s841 + $0xa0] sm:$0xff]
                  %884 = vst [vmem:[%s842 + $0xa0] sm:$0xff] %v883
                  %v885 = vld [vmem:[%s841 + $0xa8] sm:$0xff]
                  %886 = vst [vmem:[%s842 + $0xa8] sm:$0xff] %v885
                  %v887 = vld [vmem:[%s841 + $0xb0] sm:$0xff]
                  %888 = vst [vmem:[%s842 + $0xb0] sm:$0xff] %v887
                  %v889 = vld [vmem:[%s841 + $0xb8] sm:$0xff]
                  %890 = vst [vmem:[%s842 + $0xb8] sm:$0xff] %v889
                  %v891 = vld [vmem:[%s841 + $0xc0] sm:$0xff]
                  %892 = vst [vmem:[%s842 + $0xc0] sm:$0xff] %v891
                  %v893 = vld [vmem:[%s841 + $0xc8] sm:$0xff]
                  %894 = vst [vmem:[%s842 + $0xc8] sm:$0xff] %v893
                  %v895 = vld [vmem:[%s841 + $0xd0] sm:$0xff]
                  %896 = vst [vmem:[%s842 + $0xd0] sm:$0xff] %v895
                  %v897 = vld [vmem:[%s841 + $0xd8] sm:$0xff]
                  %898 = vst [vmem:[%s842 + $0xd8] sm:$0xff] %v897
                  %v899 = vld [vmem:[%s841 + $0xe0] sm:$0xff]
                  %900 = vst [vmem:[%s842 + $0xe0] sm:$0xff] %v899
                  %v901 = vld [vmem:[%s841 + $0xe8] sm:$0xff]
                  %902 = vst [vmem:[%s842 + $0xe8] sm:$0xff] %v901
                  %v903 = vld [vmem:[%s841 + $0xf0] sm:$0xff]
                  %904 = vst [vmem:[%s842 + $0xf0] sm:$0xff] %v903
                  %v905 = vld [vmem:[%s841 + $0xf8] sm:$0xff]
                  %906 = vst [vmem:[%s842 + $0xf8] sm:$0xff] %v905
                  %s907 = sadd.s32 1, %s840
                  %p908 = scmp.ge.s32.totalorder %s907, %s833
                  %s909 = scalar_select %p908, 0, %s907
                  %s910 = smul.u32 %s909, 256
                  %s911 = smul.u32 %s909, 256
                  %s912 = scalar_lea.vmem %s704, %s910 [#allocation2]
                  %s913 = scalar_lea.vmem %s715, %s911
                $region67: #{tpu_custom_call.1} parent=61 // loop_footer
                  %s837 = sadd.s32 %s835, 1
                $region68: #{tpu_custom_call.1} parent=61 // loop_footer_branch
                  %834 = sbr.rel target = $region64
                $region69: #{tpu_custom_call.1} parent=61 // loop_exit
                  _
                %s914 = sshrl.u32 %s711, 5
                %s915 = sand.u32 %s711, 31
                %s916 = smul.u32 %s914, 32
                %s917 = smul.u32 8, %s916
                %s918 = scalar_lea.vmem %s704, %s917 [#allocation2]
                %s919 = smul.u32 8, %s916
                %s920 = scalar_lea.vmem %s715, %s919
                // While loop
                $region70: #{tpu_custom_call.1} parent=61 // loop_pre_header
                  _
                $region71: #{tpu_custom_call.1} parent=61 // loop_header
                  %s922 = sphi 0, %s924
                  %p923 = scmp.ge.s32.totalorder %s922, %s915
                  %s927 = sphi 0, %s934
                  %s928 = sphi %s918, %s937
                  %s929 = sphi %s920, %s938
                $region72: #{tpu_custom_call.1} parent=61 // loop_header_branch
                  %926 = sbr.rel (%p923) target = $region76
                $region73: #{tpu_custom_call.1} parent=61 // loop_body
                  %v930 = vld [vmem:[%s928] sm:$0xff]
                  %931 = vst [vmem:[%s929] sm:$0xff] %v930
                  %s932 = sadd.s32 1, %s927
                  %p933 = scmp.ge.s32.totalorder %s932, %s915
                  %s934 = scalar_select %p933, 0, %s932
                  %s935 = smul.u32 %s934, 8
                  %s936 = smul.u32 %s934, 8
                  %s937 = scalar_lea.vmem %s918, %s935 [#allocation2]
                  %s938 = scalar_lea.vmem %s920, %s936
                $region74: #{tpu_custom_call.1} parent=61 // loop_footer
                  %s924 = sadd.s32 %s922, 1
                $region75: #{tpu_custom_call.1} parent=61 // loop_footer_branch
                  %921 = sbr.rel target = $region71
                $region76: #{tpu_custom_call.1} parent=61 // loop_exit
                  _
              $region62: #{tpu_custom_call.1} parent=39 // pred_fallthru
                _
              // Predicated region
              $region77: #{tpu_custom_call.1} parent=39 // pred_check
                _
              $region78: #{tpu_custom_call.1} parent=39 // pred_check_branch
                %940 = sbr.rel target = $region80
              $region79: #{tpu_custom_call.1} parent=39 // pred_region
                _
              $region80: #{tpu_custom_call.1} parent=39 // pred_fallthru
                _
            $region40: #{tpu_custom_call.1} parent=35 // pred_fallthru
              _
            // Predicated region
            $region41: #{tpu_custom_call.1} parent=35 // pred_check
              _
            $region42: #{tpu_custom_call.1} parent=35 // pred_check_branch
              %722 = sbr.rel target = $region44
            $region43: #{tpu_custom_call.1} parent=35 // pred_region
              %s724 = ssub.s32 256, 1
              %s725 = sshrl.u32 %s711, 5
              // While loop
              $region45: #{tpu_custom_call.1} parent=43 // loop_pre_header
                _
              $region46: #{tpu_custom_call.1} parent=43 // loop_header
                %s727 = sphi 0, %s729
                %p728 = scmp.ge.s32.totalorder %s727, %s725
                %s732 = sphi 0, %s801
                %s733 = sphi %s704, %s804
                %s734 = sphi %s715, %s805
              $region47: #{tpu_custom_call.1} parent=43 // loop_header_branch
                %731 = sbr.rel (%p728) target = $region51
              $region48: #{tpu_custom_call.1} parent=43 // loop_body
                %v735 = vld [vmem:[%s733] sm:%s724]
                %736 = vst [vmem:[%s734] sm:%s724] %v735
                %v737 = vld [vmem:[%s733 + $0x8] sm:%s724]
                %738 = vst [vmem:[%s734 + $0x8] sm:%s724] %v737
                %v739 = vld [vmem:[%s733 + $0x10] sm:%s724]
                %740 = vst [vmem:[%s734 + $0x10] sm:%s724] %v739
                %v741 = vld [vmem:[%s733 + $0x18] sm:%s724]
                %742 = vst [vmem:[%s734 + $0x18] sm:%s724] %v741
                %v743 = vld [vmem:[%s733 + $0x20] sm:%s724]
                %744 = vst [vmem:[%s734 + $0x20] sm:%s724] %v743
                %v745 = vld [vmem:[%s733 + $0x28] sm:%s724]
                %746 = vst [vmem:[%s734 + $0x28] sm:%s724] %v745
                %v747 = vld [vmem:[%s733 + $0x30] sm:%s724]
                %748 = vst [vmem:[%s734 + $0x30] sm:%s724] %v747
                %v749 = vld [vmem:[%s733 + $0x38] sm:%s724]
                %750 = vst [vmem:[%s734 + $0x38] sm:%s724] %v749
                %v751 = vld [vmem:[%s733 + $0x40] sm:%s724]
                %752 = vst [vmem:[%s734 + $0x40] sm:%s724] %v751
                %v753 = vld [vmem:[%s733 + $0x48] sm:%s724]
                %754 = vst [vmem:[%s734 + $0x48] sm:%s724] %v753
                %v755 = vld [vmem:[%s733 + $0x50] sm:%s724]
                %756 = vst [vmem:[%s734 + $0x50] sm:%s724] %v755
                %v757 = vld [vmem:[%s733 + $0x58] sm:%s724]
                %758 = vst [vmem:[%s734 + $0x58] sm:%s724] %v757
                %v759 = vld [vmem:[%s733 + $0x60] sm:%s724]
                %760 = vst [vmem:[%s734 + $0x60] sm:%s724] %v759
                %v761 = vld [vmem:[%s733 + $0x68] sm:%s724]
                %762 = vst [vmem:[%s734 + $0x68] sm:%s724] %v761
                %v763 = vld [vmem:[%s733 + $0x70] sm:%s724]
                %764 = vst [vmem:[%s734 + $0x70] sm:%s724] %v763
                %v765 = vld [vmem:[%s733 + $0x78] sm:%s724]
                %766 = vst [vmem:[%s734 + $0x78] sm:%s724] %v765
                %v767 = vld [vmem:[%s733 + $0x80] sm:%s724]
                %768 = vst [vmem:[%s734 + $0x80] sm:%s724] %v767
                %v769 = vld [vmem:[%s733 + $0x88] sm:%s724]
                %770 = vst [vmem:[%s734 + $0x88] sm:%s724] %v769
                %v771 = vld [vmem:[%s733 + $0x90] sm:%s724]
                %772 = vst [vmem:[%s734 + $0x90] sm:%s724] %v771
                %v773 = vld [vmem:[%s733 + $0x98] sm:%s724]
                %774 = vst [vmem:[%s734 + $0x98] sm:%s724] %v773
                %v775 = vld [vmem:[%s733 + $0xa0] sm:%s724]
                %776 = vst [vmem:[%s734 + $0xa0] sm:%s724] %v775
                %v777 = vld [vmem:[%s733 + $0xa8] sm:%s724]
                %778 = vst [vmem:[%s734 + $0xa8] sm:%s724] %v777
                %v779 = vld [vmem:[%s733 + $0xb0] sm:%s724]
                %780 = vst [vmem:[%s734 + $0xb0] sm:%s724] %v779
                %v781 = vld [vmem:[%s733 + $0xb8] sm:%s724]
                %782 = vst [vmem:[%s734 + $0xb8] sm:%s724] %v781
                %v783 = vld [vmem:[%s733 + $0xc0] sm:%s724]
                %784 = vst [vmem:[%s734 + $0xc0] sm:%s724] %v783
                %v785 = vld [vmem:[%s733 + $0xc8] sm:%s724]
                %786 = vst [vmem:[%s734 + $0xc8] sm:%s724] %v785
                %v787 = vld [vmem:[%s733 + $0xd0] sm:%s724]
                %788 = vst [vmem:[%s734 + $0xd0] sm:%s724] %v787
                %v789 = vld [vmem:[%s733 + $0xd8] sm:%s724]
                %790 = vst [vmem:[%s734 + $0xd8] sm:%s724] %v789
                %v791 = vld [vmem:[%s733 + $0xe0] sm:%s724]
                %792 = vst [vmem:[%s734 + $0xe0] sm:%s724] %v791
                %v793 = vld [vmem:[%s733 + $0xe8] sm:%s724]
                %794 = vst [vmem:[%s734 + $0xe8] sm:%s724] %v793
                %v795 = vld [vmem:[%s733 + $0xf0] sm:%s724]
                %796 = vst [vmem:[%s734 + $0xf0] sm:%s724] %v795
                %v797 = vld [vmem:[%s733 + $0xf8] sm:%s724]
                %798 = vst [vmem:[%s734 + $0xf8] sm:%s724] %v797
                %s799 = sadd.s32 1, %s732
                %p800 = scmp.ge.s32.totalorder %s799, %s725
                %s801 = scalar_select %p800, 0, %s799
                %s802 = smul.u32 %s801, 256
                %s803 = smul.u32 %s801, 256
                %s804 = scalar_lea.vmem %s704, %s802 [#allocation2]
                %s805 = scalar_lea.vmem %s715, %s803
              $region49: #{tpu_custom_call.1} parent=43 // loop_footer
                %s729 = sadd.s32 %s727, 1
              $region50: #{tpu_custom_call.1} parent=43 // loop_footer_branch
                %726 = sbr.rel target = $region46
              $region51: #{tpu_custom_call.1} parent=43 // loop_exit
                _
              %s806 = sshrl.u32 %s711, 5
              %s807 = sand.u32 %s711, 31
              %s808 = smul.u32 %s806, 32
              %s809 = smul.u32 8, %s808
              %s810 = scalar_lea.vmem %s704, %s809 [#allocation2]
              %s811 = smul.u32 8, %s808
              %s812 = scalar_lea.vmem %s715, %s811
              // While loop
              $region52: #{tpu_custom_call.1} parent=43 // loop_pre_header
                _
              $region53: #{tpu_custom_call.1} parent=43 // loop_header
                %s814 = sphi 0, %s816
                %p815 = scmp.ge.s32.totalorder %s814, %s807
                %s819 = sphi 0, %s826
                %s820 = sphi %s810, %s829
                %s821 = sphi %s812, %s830
              $region54: #{tpu_custom_call.1} parent=43 // loop_header_branch
                %818 = sbr.rel (%p815) target = $region58
              $region55: #{tpu_custom_call.1} parent=43 // loop_body
                %v822 = vld [vmem:[%s820] sm:%s724]
                %823 = vst [vmem:[%s821] sm:%s724] %v822
                %s824 = sadd.s32 1, %s819
                %p825 = scmp.ge.s32.totalorder %s824, %s807
                %s826 = scalar_select %p825, 0, %s824
                %s827 = smul.u32 %s826, 8
                %s828 = smul.u32 %s826, 8
                %s829 = scalar_lea.vmem %s810, %s827 [#allocation2]
                %s830 = scalar_lea.vmem %s812, %s828
              $region56: #{tpu_custom_call.1} parent=43 // loop_footer
                %s816 = sadd.s32 %s814, 1
              $region57: #{tpu_custom_call.1} parent=43 // loop_footer_branch
                %813 = sbr.rel target = $region53
              $region58: #{tpu_custom_call.1} parent=43 // loop_exit
                _
            $region44: #{tpu_custom_call.1} parent=35 // pred_fallthru
              _
          $region36: #{tpu_custom_call.1} parent=31 // pred_fallthru
            _
          %941 = vnop
        $region32: #{tpu_custom_call.1} parent=27 // pred_fallthru
          _
      $region28: #{tpu_custom_call.1} parent=5 // pred_fallthru
        _
      %p942 = scmp.le.s32.totalorder 2, %s8
      // Predicated region
      $region81: #{tpu_custom_call.1} parent=5 // pred_check
        %p943 = pneg %p942
      $region82: #{tpu_custom_call.1} parent=5 // pred_check_branch
        %945 = sbr.rel (%p943) target = $region84
      $region83: #{tpu_custom_call.1} parent=5 // pred_region
        %s946 = ssub.s32 %s8, 2
        // Predicated region
        $region85: #{tpu_custom_call.1} parent=83 // pred_check
          %p947 = pneg %p84
        $region86: #{tpu_custom_call.1} parent=83 // pred_check_branch
          %949 = sbr.rel (%p947) target = $region88
        $region87: #{tpu_custom_call.1} parent=83 // pred_region
          %s950 = sand.u32 %s69, 1
          %s951 = sand.u32 %s69, 1
          %s952 = smul.addr %s951, 512
          %s953 = scalar_lea.vmem [#allocation2], %s952
        $region88: #{tpu_custom_call.1} parent=83 // pred_fallthru
          _
      $region84: #{tpu_custom_call.1} parent=5 // pred_fallthru
        _
    $region6: #{tpu_custom_call.1} parent=1 // loop_footer
      %s12 = sadd.s32 1, %s8
    $region7: #{tpu_custom_call.1} parent=1 // loop_footer_branch
      %7 = sbr.rel target = $region3
    $region8: #{tpu_custom_call.1} parent=1 // loop_exit
      _

</llo_original>
